<compile_context>
chip_gen: v6e
topology: v6e:2x2x1
jax: 0.10.0
libtpu: 0.0.40
codegen_flags: <defaults>
</compile_context>

<pallas_src>
import functools

import jax
import jax.numpy as jnp
from jax import lax
from jax.experimental import pallas as pl
from jax.experimental.pallas import tpu as pltpu


def _round_up(x, m):
    return ((x + m - 1) // m) * m


def _rpe_kernel(coord_ref, table_ref, out_ref, *, pos_bnd, rpe_num, t_pad):
    # coord_ref: (3, TL) int32  — one lane-dense row per coordinate axis.
    # table_ref: (H, T_pad) f32 — transposed RPE table, VMEM-resident across grid.
    # out_ref:   (H, TL)    f32 — lane-dense output tile (rows along lanes).
    tl = coord_ref.shape[1]

    # Clamp to [-pos_bnd, pos_bnd] and shift to [0, rpe_num).  NOTE: correctness
    # of the ragged last tile relies on this clamp — any unspecified coords read
    # past the array end are forced into a valid range, and their output columns
    # are never written back by Pallas.
    c = jnp.clip(coord_ref[...], -pos_bnd, pos_bnd) + pos_bnd            # (3, TL)

    row = lax.broadcasted_iota(jnp.int32, (t_pad, tl), 0)                # (T_pad, TL)
    # Per-axis one-hot ranges [a*rpe_num, (a+1)*rpe_num) are disjoint, so OR-ing
    # the compares and converting once is exact (sum == select).
    hot = row == c[0:1, :]
    hot = hot | (row == (c[1:2, :] + rpe_num))
    hot = hot | (row == (c[2:3, :] + 2 * rpe_num))
    counts = hot.astype(jnp.float32)                                     # (T_pad, TL)

    # gather + sum over the 3 axes == tableT @ one-hot-counts on the MXU;
    # result is already (H, rows), so the store is lane-dense.
    out_ref[...] = jnp.dot(
        table_ref[...], counts, preferred_element_type=jnp.float32
    ).astype(out_ref.dtype)


def rpe_forward(coord, rpe_table, patch_size, *, tile_rows=2048):
    """coord: (B, N, M, 3) integer relative coords; rpe_table: (3*rpe_num, H).
    Returns (B, H, N, M) matching RPE.forward."""
    pos_bnd = int((4 * patch_size) ** (1 / 3) * 2)
    rpe_num = 2 * pos_bnd + 1
    T = 3 * rpe_num
    assert rpe_table.shape[0] == T
    H = rpe_table.shape[1]

    B, N, M, c3 = coord.shape
    assert c3 == 3
    NM = N * M

    # ---- host-side layout prep (cheap relative to the (B,H,N,M) output) ------
    # Table transposed to (H, T_pad); T padded only to a sublane multiple (8).
    # Padded columns are zero and never selected (all indices < 3*rpe_num).
    T_pad = _round_up(T, 8)
    table_t = jnp.zeros((H, T_pad), rpe_table.dtype).at[:, :T].set(rpe_table.T)

    # Coords as (B, 3, N*M): each axis becomes a lane-dense row in the kernel.
    coord_b3l = jnp.transpose(coord.astype(jnp.int32), (0, 3, 1, 2)).reshape(B, 3, NM)

    # Row tile: multiple of 128 (lane-dense output stores); full extent when the
    # input is tiny (a full-dim block is always a legal block shape).
    if NM >= tile_rows:
        TL = _round_up(tile_rows, 128)
    else:
        TL = NM
    grid = (B, pl.cdiv(NM, TL))          # ragged last row-tile handled by Pallas

    kernel = functools.partial(
        _rpe_kernel, pos_bnd=pos_bnd, rpe_num=rpe_num, t_pad=T_pad)

    out = pl.pallas_call(
        kernel,
        out_shape=jax.ShapeDtypeStruct((B, H, NM), rpe_table.dtype),
        grid_spec=pl.GridSpec(
            grid=grid,
            in_specs=[
                pl.BlockSpec((None, 3, TL), lambda b, i: (b, 0, i)),   # coord tiles
                pl.BlockSpec((H, T_pad), lambda b, i: (0, 0)),         # resident table
            ],
            out_specs=pl.BlockSpec((None, H, TL), lambda b, i: (b, 0, i)),
        ),
        compiler_params=pltpu.CompilerParams(
            dimension_semantics=("parallel", "parallel"),   # megacore-shardable
            vmem_limit_bytes=32 * 1024 * 1024,              # v7x-safe budget
        ),
        cost_estimate=pl.CostEstimate(
            flops=2 * B * NM * T_pad * H,
            transcendentals=0,
            bytes_accessed=B * NM * 3 * 4 + T_pad * H * 4 + B * NM * H * 4,
        ),
    )(coord_b3l, table_t)

    # (B, H, N*M) -> (B, H, N, M): contiguous, metadata-only (no wrapper permute).
    return out.reshape(B, H, N, M)


def init_rpe_table(key, patch_size, num_heads):
    """Mimics nn.init.trunc_normal_(std=0.02) on a (3*rpe_num, num_heads) table."""
    pos_bnd = int((4 * patch_size) ** (1 / 3) * 2)
    rpe_num = 2 * pos_bnd + 1
    t = jax.random.truncated_normal(
        key, -2.0, 2.0, (3 * rpe_num, num_heads), jnp.float32) * 0.02
    return t


def rpe_reference(coord, rpe_table, patch_size):
    """Pure-JAX reference matching the PyTorch forward."""
    pos_bnd = int((4 * patch_size) ** (1 / 3) * 2)
    rpe_num = 2 * pos_bnd + 1
    idx = jnp.clip(coord, -pos_bnd, pos_bnd) + pos_bnd + jnp.arange(3) * rpe_num
    out = rpe_table[idx.reshape(-1)]
    out = out.reshape(idx.shape + (rpe_table.shape[-1],)).sum(3)
    return jnp.transpose(out, (0, 3, 1, 2))


if __name__ == "__main__":
    patch_size, num_heads = 8, 8
    B, N, M = 2, 8, 8         # coord: (batch=2, n=8, m=8, 3)

    key = jax.random.PRNGKey(0)
    kc, kt = jax.random.split(key)
    # integer relative coordinates, including values outside [-pos_bnd, pos_bnd]
    coord = jax.random.randint(kc, (B, N, M, 3), -12, 13, dtype=jnp.int32)
    rpe_table = init_rpe_table(kt, patch_size, num_heads)

    out = rpe_forward(coord, rpe_table, patch_size)
    out = jax.block_until_ready(out)

    ref = rpe_reference(coord, rpe_table, patch_size)
    assert out.shape == (B, num_heads, N, M)
    assert jnp.allclose(out, ref, atol=1e-5, rtol=1e-5), "mismatch vs reference"

    print("KERNEL_OK")
</pallas_src>

<mosaic_0001>
module attributes {stable_mosaic.version = 11 : i64} {
  func.func @_rpe_kernel(%arg0: i32, %arg1: i32, %arg2: memref<1x3x64xi32, #tpu.memory_space<vmem>>, %arg3: memref<8x40xf32, #tpu.memory_space<vmem>>, %arg4: memref<1x8x64xf32, #tpu.memory_space<vmem>>) attributes {dimension_semantics = [#tpu.dimension_semantics<parallel>, #tpu.dimension_semantics<parallel>], iteration_bounds = array<i64: 2, 1>, scalar_prefetch = 0 : i64, scratch_operands = 0 : i64, tpu.core_type = #tpu.core_type<tc>, window_params = [{transform_indices = @transform_0, window_bounds = array<i64: 1, 3, 64>}, {pipeline_mode = #tpu.pipeline_mode<synchronous>, transform_indices = @transform_1, window_bounds = array<i64: 8, 40>}, {transform_indices = @transform_2, window_bounds = array<i64: 1, 8, 64>}]} {
    %c0 = arith.constant 0 : index
    %c0_0 = arith.constant 0 : index
    %c0_1 = arith.constant 0 : index
    %0 = vector.load %arg2[%c0, %c0_0, %c0_1] : memref<1x3x64xi32, #tpu.memory_space<vmem>>, vector<1x3x64xi32>
    %1 = vector.shape_cast %0 : vector<1x3x64xi32> to vector<3x64xi32>
    %c-6_i32 = arith.constant -6 : i32
    %c6_i32 = arith.constant 6 : i32
    %2 = vector.broadcast %c-6_i32 : i32 to vector<3x64xi32>
    %3 = arith.maxsi %2, %1 : vector<3x64xi32>
    %4 = vector.broadcast %c6_i32 : i32 to vector<3x64xi32>
    %5 = arith.minsi %4, %3 : vector<3x64xi32>
    %c6_i32_2 = arith.constant 6 : i32
    %6 = vector.broadcast %c6_i32_2 : i32 to vector<3x64xi32>
    %7 = arith.addi %5, %6 : vector<3x64xi32>
    %8 = tpu.iota {dimensions = array<i32: 0>} : vector<40x64xi32>
    %9 = vector.extract_strided_slice %7 {offsets = [0, 0], sizes = [1, 64], strides = [1, 1]} : vector<3x64xi32> to vector<1x64xi32>
    %10 = vector.broadcast %9 : vector<1x64xi32> to vector<40x64xi32>
    %11 = arith.cmpi eq, %8, %10 : vector<40x64xi32>
    %12 = vector.extract_strided_slice %7 {offsets = [1, 0], sizes = [1, 64], strides = [1, 1]} : vector<3x64xi32> to vector<1x64xi32>
    %c13_i32 = arith.constant 13 : i32
    %13 = vector.broadcast %c13_i32 : i32 to vector<1x64xi32>
    %14 = arith.addi %12, %13 : vector<1x64xi32>
    %15 = vector.broadcast %14 : vector<1x64xi32> to vector<40x64xi32>
    %16 = arith.cmpi eq, %8, %15 : vector<40x64xi32>
    %17 = arith.ori %11, %16 : vector<40x64xi1>
    %18 = vector.extract_strided_slice %7 {offsets = [2, 0], sizes = [1, 64], strides = [1, 1]} : vector<3x64xi32> to vector<1x64xi32>
    %c26_i32 = arith.constant 26 : i32
    %19 = vector.broadcast %c26_i32 : i32 to vector<1x64xi32>
    %20 = arith.addi %18, %19 : vector<1x64xi32>
    %21 = vector.broadcast %20 : vector<1x64xi32> to vector<40x64xi32>
    %22 = arith.cmpi eq, %8, %21 : vector<40x64xi32>
    %23 = arith.ori %17, %22 : vector<40x64xi1>
    %24 = arith.extui %23 : vector<40x64xi1> to vector<40x64xi32>
    %25 = arith.sitofp %24 : vector<40x64xi32> to vector<40x64xf32>
    %c0_3 = arith.constant 0 : index
    %c0_4 = arith.constant 0 : index
    %26 = vector.load %arg3[%c0_3, %c0_4] : memref<8x40xf32, #tpu.memory_space<vmem>>, vector<8x40xf32>
    %cst = arith.constant dense<0.000000e+00> : vector<8x64xf32>
    %27 = tpu.matmul %26, %25, %cst {dimension_numbers = #tpu.dot_dimension_numbers<[1], [0], [0], [1], [0, 0, 1, 1], [], []>} : vector<8x40xf32>, vector<40x64xf32>, vector<8x64xf32> -> vector<8x64xf32>
    %c0_5 = arith.constant 0 : index
    %c0_6 = arith.constant 0 : index
    %c0_7 = arith.constant 0 : index
    %28 = vector.load %arg4[%c0_5, %c0_6, %c0_7] : memref<1x8x64xf32, #tpu.memory_space<vmem>>, vector<1x8x64xf32>
    %29 = vector.shape_cast %28 : vector<1x8x64xf32> to vector<8x64xf32>
    %30 = vector.shape_cast %27 : vector<8x64xf32> to vector<1x8x64xf32>
    tpu.vector_store %arg4[%c0_5, %c0_6, %c0_7], %30 {strides = array<i32>} : memref<1x8x64xf32, #tpu.memory_space<vmem>>, vector<1x8x64xf32>,
    return
  }
  func.func @transform_0(%arg0: i32, %arg1: i32) -> (i32, i32, i32) {
    %c0_i32 = arith.constant 0 : i32
    %c0_i32_0 = arith.constant 0 : i32
    return %arg0, %c0_i32, %arg1 : i32, i32, i32
  }
  func.func @transform_1(%arg0: i32, %arg1: i32) -> (i32, i32) {
    %c0_i32 = arith.constant 0 : i32
    %c0_i32_0 = arith.constant 0 : i32
    %c0_i32_1 = arith.constant 0 : i32
    return %c0_i32, %c0_i32_0 : i32, i32
  }
  func.func @transform_2(%arg0: i32, %arg1: i32) -> (i32, i32, i32) {
    %c0_i32 = arith.constant 0 : i32
    %c0_i32_0 = arith.constant 0 : i32
    return %arg0, %c0_i32, %arg1 : i32, i32, i32
  }
}

</mosaic_0001>

<llo_original>
// kernel: tpu_custom_call.1
$region0: #{tpu_custom_call.1}
  #allocation0 [shape = 'u32[]', space=smem, size = 0x4, offset = 0x4, fixed_abs, tag = 'smem constant byte address 0x4 - core index']
  #allocation1 [shape = 'u32[144,128]{1,0:T(1,128)}', space=vmem, size = 0x12000, scoped, tag = 'internal scratch']
  %s0 = inlined_call_operand.vmem [shape: s32[2,3,64], index: 0, kind: input, shape index: {}]
  %s1 = inlined_call_operand.vmem [shape: f32[8,40], index: 1, kind: input, shape index: {}]
  %s2 = inlined_call_operand.hbm [shape: f32[2,8,64], index: 2, kind: output, shape index: {}]
  %s3 = sld [smem:[#allocation0]]
  $region41: #{tpu_custom_call.1} parent=0
    _
  %s5 = ssub.s32 1, %s3
  %s6 = scalar_select 0, %s5, %s3
  $region1: #{tpu_custom_call.1} parent=0
    #allocation2 [shape = 'u8[8192]{0}', space=vmem, size = 0x2000, scoped, tag = 'output window, operand 0']
    #allocation3 [shape = 's32[2]{0}', space=sflag, size = 0x8, scoped, tag = 'scoped memory for tpu_custom_call.1']
    %7 = vsyncpa [#allocation3], 0
    %s8 = scalar_lea.sflag [#allocation3], 1
    %9 = vsyncpa %s8, 0
    loop: start=0, step=1, limit=4
    $region2: #{tpu_custom_call.1} parent=1 // loop_pre_header
      _
    $region3: #{tpu_custom_call.1} parent=1 // loop_header
      %s11 = sphi 0, %s15
      %p12 = scmp.ge.s32.totalorder %s11, 4
      %s18 = sphi 0, %s30
      %s19 = sphi 0, %s26
      %s20 = sphi 0, %s18
      %s21 = sphi 0, %s19
      %s22 = sphi 0, %s20
      %s23 = sphi 0, %s21
      %s35 = sphi 0, %s37
      %s38 = sphi 0, %s35
      %s39 = sphi 0, %s38
      %s55 = sphi 0, %s39
      %s59 = sphi 0, %s59
      %s61 = sphi 0, %s59
      %s62 = sphi 0, %s61
      %s76 = sphi 0, %s62
      %s84 = sphi 0, %s86
      %s87 = sphi 0, %s84
      %s88 = sphi 0, %s87
      %s104 = sphi 0, %s88
    $region4: #{tpu_custom_call.1} parent=1 // loop_header_branch
      %14 = sbr.rel (%p12) target = $region8
    $region5: #{tpu_custom_call.1} parent=1 // loop_body
      %s16 = ssub.s32 %s11, 1
      %s17 = ssub.s32 %s11, 2
      %s24 = sadd.s32 1, %s19
      %p25 = scmp.ge.s32.totalorder %s24, 1
      %s26 = scalar_select %p25, 0, %s24
      %s27 = sadd.s32 1, %s18
      %s28 = scalar_select %p25, %s27, %s18
      %p29 = scmp.ge.s32.totalorder %s28, 2
      %s30 = scalar_select %p29, 0, %s28
      %s31 = ssub.s32 %s18, %s30
      %s32 = ssub.s32 %s19, %s26
      %s33 = sor.u32 %s31, %s32
      %p34 = scmp.eq.s32.totalorder %s33, 0
      %s36 = sadd.s32 %s35, 1
      %s37 = scalar_select %p34, %s35, %s36
      %p40 = pneg %p34
      %p41 = scmp.eq.s32.totalorder %s11, 1
      %p42 = por %p40, %p41
      %p43 = scmp.ne.s32.totalorder %s35, %s38
      %p44 = scmp.eq.s32.totalorder %s11, 0
      %p45 = por %p43, %p44
      %p46 = scmp.ne.s32.totalorder %s35, %s38
      %p47 = scmp.eq.s32.totalorder %s16, 1
      %p48 = por %p46, %p47
      %p49 = scmp.ne.s32.totalorder %s38, %s39
      %p50 = scmp.eq.s32.totalorder %s16, 0
      %p51 = por %p49, %p50
      %p52 = scmp.ne.s32.totalorder %s38, %s39
      %p53 = scmp.eq.s32.totalorder %s17, 1
      %p54 = por %p52, %p53
      %p56 = scmp.ne.s32.totalorder %s39, %s55
      %p57 = scmp.eq.s32.totalorder %s17, 0
      %p58 = por %p56, %p57
      %s60 = sadd.s32 %s59, 1
      %p63 = scmp.eq.s32.totalorder %s11, 1
      %p64 = scmp.ne.s32.totalorder %s59, %s61
      %p65 = scmp.eq.s32.totalorder %s11, 0
      %p66 = por %p64, %p65
      %p67 = scmp.ne.s32.totalorder %s59, %s61
      %p68 = scmp.eq.s32.totalorder %s16, 1
      %p69 = por %p67, %p68
      %p70 = scmp.ne.s32.totalorder %s61, %s62
      %p71 = scmp.eq.s32.totalorder %s16, 0
      %p72 = por %p70, %p71
      %p73 = scmp.ne.s32.totalorder %s61, %s62
      %p74 = scmp.eq.s32.totalorder %s17, 1
      %p75 = por %p73, %p74
      %p77 = scmp.ne.s32.totalorder %s62, %s76
      %p78 = scmp.eq.s32.totalorder %s17, 0
      %p79 = por %p77, %p78
      %s80 = ssub.s32 %s18, %s30
      %s81 = ssub.s32 %s19, %s26
      %s82 = sor.u32 %s80, %s81
      %p83 = scmp.eq.s32.totalorder %s82, 0
      %s85 = sadd.s32 %s84, 1
      %s86 = scalar_select %p83, %s84, %s85
      %p89 = pneg %p83
      %p90 = scmp.eq.s32.totalorder %s11, 1
      %p91 = por %p89, %p90
      %p92 = scmp.ne.s32.totalorder %s84, %s87
      %p93 = scmp.eq.s32.totalorder %s11, 0
      %p94 = por %p92, %p93
      %p95 = scmp.ne.s32.totalorder %s84, %s87
      %p96 = scmp.eq.s32.totalorder %s16, 1
      %p97 = por %p95, %p96
      %p98 = scmp.ne.s32.totalorder %s87, %s88
      %p99 = scmp.eq.s32.totalorder %s16, 0
      %p100 = por %p98, %p99
      %p101 = scmp.ne.s32.totalorder %s87, %s88
      %p102 = scmp.eq.s32.totalorder %s17, 1
      %p103 = por %p101, %p102
      %p105 = scmp.ne.s32.totalorder %s88, %s104
      %p106 = scmp.eq.s32.totalorder %s17, 0
      %p107 = por %p105, %p106
      %p108 = scmp.le.s32.totalorder 1, %s11
      %p109 = scmp.lt.s32.totalorder %s11, 3
      %p110 = pnand %p108, %p109
      %p111 = pneg %p110
      // Predicated region
      $region9: #{tpu_custom_call.1} parent=5 // pred_check
        _
      $region10: #{tpu_custom_call.1} parent=5 // pred_check_branch
        %113 = sbr.rel (%p110) target = $region12
      $region11: #{tpu_custom_call.1} parent=5 // pred_region
        %s114 = ssub.s32 %s11, 1
        // Predicated region
        $region13: #{tpu_custom_call.1} parent=11 // pred_check
          %p115 = pneg %p72
        $region14: #{tpu_custom_call.1} parent=11 // pred_check_branch
          %117 = sbr.rel (%p115) target = $region16
        $region15: #{tpu_custom_call.1} parent=11 // pred_region
          _
        $region16: #{tpu_custom_call.1} parent=11 // pred_fallthru
          _
      $region12: #{tpu_custom_call.1} parent=5 // pred_fallthru
        _
      %p118 = scmp.lt.s32.totalorder %s11, 2
      // Predicated region
      $region17: #{tpu_custom_call.1} parent=5 // pred_check
        %p119 = pneg %p118
      $region18: #{tpu_custom_call.1} parent=5 // pred_check_branch
        %121 = sbr.rel (%p119) target = $region20
      $region19: #{tpu_custom_call.1} parent=5 // pred_region
        // Predicated region
        $region21: #{tpu_custom_call.1} parent=19 // pred_check
          %p122 = pneg %p45
        $region22: #{tpu_custom_call.1} parent=19 // pred_check_branch
          %124 = sbr.rel (%p122) target = $region24
        $region23: #{tpu_custom_call.1} parent=19 // pred_region
          %p125 = scmp.lt.s32.totalorder %s18, 1
          %s126 = scalar_select %p125, %s18, 1
          %p127 = scmp.lt.s32.totalorder %s19, 0
          %s128 = scalar_select %p127, %s19, 0
          %s129 = sadd.s32 %s128, %s126
          %s130 = smul.addr %s129, 4
          %s131 = scalar_lea.vmem %s0, %s130
        $region24: #{tpu_custom_call.1} parent=19 // pred_fallthru
          _
      $region20: #{tpu_custom_call.1} parent=5 // pred_fallthru
        _
      %p132 = scmp.le.s32.totalorder 1, %s11
      %p133 = scmp.lt.s32.totalorder %s11, 3
      %p134 = pnand %p132, %p133
      %p135 = pneg %p134
      // Predicated region
      $region25: #{tpu_custom_call.1} parent=5 // pred_check
        _
      $region26: #{tpu_custom_call.1} parent=5 // pred_check_branch
        %137 = sbr.rel (%p134) target = $region28
      $region27: #{tpu_custom_call.1} parent=5 // pred_region
        %s138 = ssub.s32 %s11, 1
        %p139 = scmp.lt.s32.totalorder %s20, 1
        %s140 = scalar_select %p139, %s20, 1
        %p141 = scmp.lt.s32.totalorder %s21, 0
        %s142 = scalar_select %p141, %s21, 0
        %s143 = sadd.s32 %s142, %s140
        %s144 = smul.addr %s143, 4
        %s145 = scalar_lea.vmem %s0, %s144
        %p146 = pneg %p51
        %p147 = pneg %p48
        %p148 = pneg %p72
        %p149 = pneg %p69
        %p150 = pneg %p100
        %p151 = pneg %p97
        %s152 = sand.u32 %s87, 1
        %s153 = scalar_lea.sflag [#allocation3], %s152
        %s154 = sand.u32 %s87, 1
        %s155 = smul.addr %s154, 8
        %s156 = scalar_lea.vmem [#allocation2], %s155
        %p157 = scmp.lt.s32.totalorder %s20, 1
        %s158 = scalar_select %p157, %s20, 1
        %p159 = scmp.lt.s32.totalorder %s21, 0
        %s160 = scalar_select %p159, %s21, 0
        %s161 = sadd.s32 %s160, %s158
        %s162 = smul.addr %s161, 4
        %s163 = scalar_lea.vmem %s0, %s162
        %v164 = vld [vmem:[%s163] sm:$0x7]
        %vm165 = vcmp.gt.s32.totalorder %v164, 4294967290
        %v166 = vsel %vm165, %v164, 4294967290
        %vm167 = vcmp.lt.s32.totalorder %v166, 6
        %v168 = vsel %vm167, %v166, 6
        %v169 = vadd.s32 %v168, 6
        %v170 = vlaneseq
        %v171 = vshrl.u32 %v170, 7
        %v172 = vadd.s32 %v171, 8
        %v173 = vadd.s32 %v171, 16
        %v174 = vadd.s32 %v171, 24
        %v175 = vadd.s32 %v171, 32
        %v176 = vlaneseq
        %v177 = vshrl.u32 %v176, 7
        %v178 = vsub.s32 0, %v177
        %v179 = vrot.slane %v169, %v178
        %vm180 = vcmp.eq.s32.totalorder %v171, %v179
        %vm181 = vcmp.eq.s32.totalorder %v172, %v179
        %vm182 = vcmp.eq.s32.totalorder %v173, %v179
        %vm183 = vcmp.eq.s32.totalorder %v174, %v179
        %vm184 = vcmp.eq.s32.totalorder %v175, %v179
        %v185 = vadd.s32 %v169, 13
        %v186 = vlaneseq
        %v187 = vshrl.u32 %v186, 7
        %v188 = vsub.s32 1, %v187
        %v189 = vrot.slane %v185, %v188
        %vm190 = vcmp.eq.s32.totalorder %v171, %v189
        %vm191 = vcmp.eq.s32.totalorder %v172, %v189
        %vm192 = vcmp.eq.s32.totalorder %v173, %v189
        %vm193 = vcmp.eq.s32.totalorder %v174, %v189
        %vm194 = vcmp.eq.s32.totalorder %v175, %v189
        %vm195 = vmor %vm180, %vm190
        %vm196 = vmor %vm181, %vm191
        %vm197 = vmor %vm182, %vm192
        %vm198 = vmor %vm183, %vm193
        %vm199 = vmor %vm184, %vm194
        %v200 = vadd.s32 %v169, 26
        %v201 = vlaneseq
        %v202 = vshrl.u32 %v201, 7
        %v203 = vsub.s32 2, %v202
        %v204 = vrot.slane %v200, %v203
        %vm205 = vcmp.eq.s32.totalorder %v171, %v204
        %vm206 = vcmp.eq.s32.totalorder %v172, %v204
        %vm207 = vcmp.eq.s32.totalorder %v173, %v204
        %vm208 = vcmp.eq.s32.totalorder %v174, %v204
        %vm209 = vcmp.eq.s32.totalorder %v175, %v204
        %vm210 = vmor %vm195, %vm205
        %vm211 = vmor %vm196, %vm206
        %vm212 = vmor %vm197, %vm207
        %vm213 = vmor %vm198, %vm208
        %vm214 = vmor %vm199, %vm209
        %v215 = vsel %vm210, 1, 0
        %v216 = vsel %vm211, 1, 0
        %v217 = vsel %vm212, 1, 0
        %v218 = vsel %vm213, 1, 0
        %v219 = vsel %vm214, 1, 0
        %v220 = vcvt.s32.f32 %v215
        %v221 = vcvt.s32.f32 %v216
        %v222 = vcvt.s32.f32 %v217
        %v223 = vcvt.s32.f32 %v218
        %v224 = vcvt.s32.f32 %v219
        %v225 = vld [vmem:[%s1] sm:$0xff]
        %vm226 = vcmask 326656
        %v228 = vsel %vm226, %v225, 0
        %230 = vmatprep.subr.mxu0 0.0
        %231 = vmatpush1.msra.mxu0 0.0
        %232 = vmatprep.subr.mxu0 0.0
        %233 = vmatpush1.msra.mxu0 0.0
        %234 = vmatprep.subr.mxu0 0.0
        %235 = vmatpush1.msra.mxu0 0.0
        %236 = vmatprep.subr.mxu0 0.0
        %237 = vmatpush1.msra.mxu0 0.0
        %238 = vmatprep.subr.mxu0 0.0
        %239 = vmatpush1.msra.mxu0 0.0
        %240 = vmatprep.subr.mxu0 0.0
        %241 = vmatpush1.msra.mxu0 0.0
        %242 = vmatprep.subr.mxu0 0.0
        %243 = vmatpush1.msra.mxu0 0.0
        %244 = vmatprep.subr.mxu0 0.0
        %245 = vmatpush1.msra.mxu0 0.0
        %246 = vmatprep.subr.mxu0 0.0
        %247 = vmatpush1.msra.mxu0 0.0
        %248 = vmatprep.subr.mxu0 0.0
        %249 = vmatpush1.msra.mxu0 0.0
        %250 = vmatprep.subr.mxu0 0.0
        %251 = vmatpush1.msra.mxu0 0.0
        %252 = vmatprep.subr.mxu0 0.0
        %253 = vmatpush1.msra.mxu0 %v224
        %254 = vmatprep.subr.mxu0 0.0
        %255 = vmatpush1.msra.mxu0 %v223
        %256 = vmatprep.subr.mxu0 0.0
        %257 = vmatpush1.msra.mxu0 %v222
        %258 = vmatprep.subr.mxu0 0.0
        %259 = vmatpush1.msra.mxu0 %v221
        %260 = vmatprep.subr.mxu0 0.0
        %261 = vmatpush1.msra.mxu0 %v220
        %262 = vmatprep.subr.mxu0 0.0
        %263 = vmatpush2.msra.mxu0 0.0
        %264 = vmatprep.subr.mxu0 0.0
        %265 = vmatpush2.msra.mxu0 0.0
        %266 = vmatprep.subr.mxu0 0.0
        %267 = vmatpush2.msra.mxu0 0.0
        %268 = vmatprep.subr.mxu0 0.0
        %269 = vmatpush2.msra.mxu0 0.0
        %270 = vmatprep.subr.mxu0 0.0
        %271 = vmatpush2.msra.mxu0 0.0
        %272 = vmatprep.subr.mxu0 0.0
        %273 = vmatpush2.msra.mxu0 0.0
        %274 = vmatprep.subr.mxu0 0.0
        %275 = vmatpush2.msra.mxu0 0.0
        %276 = vmatprep.subr.mxu0 0.0
        %277 = vmatpush2.msra.mxu0 0.0
        %278 = vmatprep.subr.mxu0 0.0
        %279 = vmatpush2.msra.mxu0 0.0
        %280 = vmatprep.subr.mxu0 0.0
        %281 = vmatpush2.msra.mxu0 0.0
        %282 = vmatprep.subr.mxu0 0.0
        %283 = vmatpush2.msra.mxu0 0.0
        %284 = vmatprep.subr.mxu0 0.0
        %285 = vmatpush2.msra.mxu0 0.0
        %286 = vmatprep.subr.mxu0 0.0
        %287 = vmatpush2.msra.mxu0 0.0
        %288 = vmatprep.subr.mxu0 0.0
        %289 = vmatpush2.msra.mxu0 0.0
        %290 = vmatprep.subr.mxu0 0.0
        %291 = vmatpush2.msra.mxu0 0.0
        %292 = vmatprep.subr.mxu0 0.0
        %293 = vmatpush2.msra.mxu0 0.0
        %294 = vmatprep.mubr.f32.mxu0 0.0
        %295 = vmatmul.mubr.f32.gmra.mxu0 %v228
        %v296 = vpop.f32.mrf.mxu0
        %v297 = vadd.f32 0.0, %v296
        %v298 = vpop.f32.mrf.mxu0
        %299 = vdwg.mxu0
        %vm300 = vcmask 523264
        %301 = vst.msk [vmem:[%s156] sm:$0xff] %vm300, %v297
        %s302 = sand.u32 %s87, 1
        %s303 = scalar_lea.sflag [#allocation3], %s302
        %s304 = sand.u32 %s87, 1
        %s305 = smul.addr %s304, 8
        %s306 = scalar_lea.vmem [#allocation2], %s305
        // Predicated region
        $region29: #{tpu_custom_call.1} parent=27 // pred_check
          %p307 = pneg %p97
        $region30: #{tpu_custom_call.1} parent=27 // pred_check_branch
          %309 = sbr.rel (%p307) target = $region32
        $region31: #{tpu_custom_call.1} parent=27 // pred_region
          %s311 = ssub.s32 128, 128
          %312 = vsyncadd %s303, %s311
          %s313 = sadd.s32 %s21, %s20
          %s314 = smul.addr %s313, 128
          %s315 = scalar_lea.hbm %s2, %s314
          %s317 = sshll.u32 %s306, 4
          %s318 = int_to_ptr.vmem [resolvable:$true] %s317
          %320 = dma.vmem_to_hbm [thread:$0]  %s318, 128, %s315, %s303
        $region32: #{tpu_custom_call.1} parent=27 // pred_fallthru
          _
      $region28: #{tpu_custom_call.1} parent=5 // pred_fallthru
        _
      %p321 = scmp.le.s32.totalorder 2, %s11
      // Predicated region
      $region33: #{tpu_custom_call.1} parent=5 // pred_check
        %p322 = pneg %p321
      $region34: #{tpu_custom_call.1} parent=5 // pred_check_branch
        %324 = sbr.rel (%p322) target = $region36
      $region35: #{tpu_custom_call.1} parent=5 // pred_region
        %s325 = ssub.s32 %s11, 2
        // Predicated region
        $region37: #{tpu_custom_call.1} parent=35 // pred_check
          %p326 = pneg %p103
        $region38: #{tpu_custom_call.1} parent=35 // pred_check_branch
          %328 = sbr.rel (%p326) target = $region40
        $region39: #{tpu_custom_call.1} parent=35 // pred_region
          %s329 = sand.u32 %s88, 1
          %s330 = scalar_lea.sflag [#allocation3], %s329
          %s331 = sand.u32 %s88, 1
          %s332 = smul.addr %s331, 8
          %s333 = scalar_lea.vmem [#allocation2], %s332
          %334 = dma.done %s330, 128
        $region40: #{tpu_custom_call.1} parent=35 // pred_fallthru
          _
      $region36: #{tpu_custom_call.1} parent=5 // pred_fallthru
        _
    $region6: #{tpu_custom_call.1} parent=1 // loop_footer
      %s15 = sadd.s32 1, %s11
    $region7: #{tpu_custom_call.1} parent=1 // loop_footer_branch
      %10 = sbr.rel target = $region3
    $region8: #{tpu_custom_call.1} parent=1 // loop_exit
      _
    %335 = vsyncpa [#allocation3], 1
    %s336 = scalar_lea.sflag [#allocation3], 1
    %337 = vsyncpa %s336, 1

</llo_original>
